<compile_context>
chip_gen: v7x
topology: tpu7x:2x2x1
jax: 0.10.0
libtpu: 0.0.40
codegen_flags: <defaults>
</compile_context>

<pallas_src>
import jax
import jax.numpy as jnp
from jax import lax
from jax.experimental import pallas as pl
from jax.experimental.pallas import tpu as pltpu


def _resblock_kernel(x_ref, w1_ref, b1_ref, w2_ref, b2_ref, out_ref, pad_ref):
    """One batch-tile of the residual block, fully lane-dense.

    x_ref  : (nb, H, W*C)    activation tile, channels folded into the lane axis
    w*_ref : (3, W*C, W*C)   per-kernel-row block-Toeplitz conv weights (kw taps + W-padding folded)
    b*_ref : (1, W*C)        bias tiled across W (f32)
    out_ref: (nb, H, W*C)
    pad_ref: (nb, H+2, W*C)  VMEM scratch; rows 1..H = conv input, rows 0 and H+1 = zero halo
    """
    nb, hp2, L = pad_ref.shape
    H = hp2 - 2

    # Zero ONLY the two halo rows (interior is fully overwritten by every conv). Done every grid
    # step so the kernel stays correct under "parallel" core sharding.
    zero_row = jnp.zeros((nb, 1, L), pad_ref.dtype)
    pad_ref[:, pl.ds(0, 1), :] = zero_row
    pad_ref[:, pl.ds(H + 1, 1), :] = zero_row

    x_in = x_ref[...]
    x_f32 = x_in.astype(jnp.float32)

    def conv3x3(inp, w_ref, b_ref):
        # inp: (nb, H, L). Returns conv(inp) + bias in f32, shape (nb, H, L).
        pad_ref[:, pl.ds(1, H), :] = inp.astype(pad_ref.dtype)
        bias = b_ref[...].astype(jnp.float32)                 # (1, L), broadcasts over (H, L)
        per_batch = []
        for bi in range(nb):                                  # static unroll; nb is tiny (default 1)
            acc = jnp.zeros((H, L), jnp.float32)
            for kh in range(3):                               # 3 accumulating MXU matmuls, no im2col
                rows = pad_ref[bi, pl.ds(kh, H), :]           # (H, L) sublane row-slice (tap kh)
                acc = acc + jnp.dot(rows, w_ref[kh, :, :],
                                    preferred_element_type=jnp.float32)
            per_batch.append(acc + bias)
        return jnp.stack(per_batch, axis=0)                   # (nb, H, L)

    y = jnp.maximum(conv3x3(x_in, w1_ref, b1_ref), 0.0)       # relu(conv1(x)), f32
    z = conv3x3(y, w2_ref, b2_ref)                            # conv2(y), f32
    out_ref[...] = jnp.maximum(x_f32 + z, 0.0).astype(out_ref.dtype)


def _fold_conv_weight(w, W):
    """Fold a (3, 3, C, C) conv weight (kh, kw, cin, cout) into 3 block-Toeplitz matrices of
    shape (W*C, W*C), one per kernel row, applying the kw taps + W-direction padding=1 as a
    single matmul on a lane-dense (H, W*C) row block:

        folded[kh, w_in*C + c_in, w_out*C + c_out] = w[kh, w_in - w_out + 1, c_in, c_out]
        (zero where the kw tap index falls outside [0, 2]).
    """
    C = w.shape[-1]
    w_in = jnp.arange(W)[:, None]
    w_out = jnp.arange(W)[None, :]
    kw = w_in - w_out + 1                                     # (W, W)
    valid = ((kw >= 0) & (kw <= 2)).astype(w.dtype)
    blocks = w[:, jnp.clip(kw, 0, 2), :, :]                   # (3, W, W, C, C)
    blocks = blocks * valid[None, :, :, None, None]
    # (3, W, W, C, C) -> (3, W, C, W, C) -> (3, W*C, W*C)
    return blocks.transpose(0, 1, 3, 2, 4).reshape(3, W * C, W * C)


def residual_block_nhwc(x_nhwc, w1, b1, w2, b2, *, batch_tile=1):
    """Channels-last entry point (no layout transposes on the hot path).

    x_nhwc: (N, H, W, C); w1/w2: (3, 3, C, C) in (kh, kw, cin, cout) order; b1/b2: (C,)
    """
    N, H, W, C = x_nhwc.shape
    nb = batch_tile
    assert N % nb == 0, "batch must be divisible by batch_tile"
    L = W * C

    # bf16 inputs feed the MXU in bf16 (v6e/v7x fast path); f32 inputs stay f32 so results match
    # an f32 reference. Elementwise math is f32 inside the kernel either way (v5e-friendly).
    mm_dtype = jnp.bfloat16 if x_nhwc.dtype == jnp.bfloat16 else jnp.float32

    x2d = x_nhwc.reshape(N, H, L)                             # contiguous (free) reshape
    w1f = _fold_conv_weight(w1.astype(jnp.float32), W).astype(mm_dtype)
    w2f = _fold_conv_weight(w2.astype(jnp.float32), W).astype(mm_dtype)
    b1f = jnp.tile(b1.astype(jnp.float32), W).reshape(1, L)
    b2f = jnp.tile(b2.astype(jnp.float32), W).reshape(1, L)

    # Explicit VMEM budget (v7x: 64 MiB physical / 32 MiB default-scoped):
    # double-buffered in/out tiles + double-buffered folded weights + biases + pad scratch.
    mm_isz = jnp.dtype(mm_dtype).itemsize
    io_bytes = 2 * 2 * nb * H * L * jnp.dtype(x_nhwc.dtype).itemsize
    w_bytes = 2 * 2 * 3 * L * L * mm_isz
    scratch_bytes = nb * (H + 2) * L * mm_isz
    est = io_bytes + w_bytes + 2 * 2 * L * 4 + scratch_bytes
    vmem_limit = int(min(max(4 * est, 32 << 20), 48 << 20))   # v7x-safe cap

    out2d = pl.pallas_call(
        _resblock_kernel,
        out_shape=jax.ShapeDtypeStruct((N, H, L), x_nhwc.dtype),
        grid=(N // nb,),
        in_specs=[
            pl.BlockSpec((nb, H, L), lambda n: (n, 0, 0)),     # activations (lane-dense)
            pl.BlockSpec((3, L, L), lambda n: (0, 0, 0)),      # w1 (VMEM-resident)
            pl.BlockSpec((1, L), lambda n: (0, 0)),            # b1
            pl.BlockSpec((3, L, L), lambda n: (0, 0, 0)),      # w2 (VMEM-resident)
            pl.BlockSpec((1, L), lambda n: (0, 0)),            # b2
        ],
        out_specs=pl.BlockSpec((nb, H, L), lambda n: (n, 0, 0)),
        scratch_shapes=[pltpu.VMEM((nb, H + 2, L), mm_dtype)],
        compiler_params=pltpu.CompilerParams(
            dimension_semantics=("parallel",),
            vmem_limit_bytes=vmem_limit),
    )(x2d, w1f, b1f, w2f, b2f)
    return out2d.reshape(N, H, W, C)


def residual_block(x_nchw, w1, b1, w2, b2):
    """PyTorch-facing entry point: NCHW in, NCHW out (layout change only at the boundary)."""
    x_nhwc = jnp.transpose(x_nchw, (0, 2, 3, 1))
    y_nhwc = residual_block_nhwc(x_nhwc, w1, b1, w2, b2)
    return jnp.transpose(y_nhwc, (0, 3, 1, 2))


def _reference(x_nchw, w1, b1, w2, b2):
    """Plain-JAX reference (NCHW conv, matches PyTorch semantics)."""
    def conv(x, w_khwio, b):
        w_oihw = jnp.transpose(w_khwio, (3, 2, 0, 1))
        y = lax.conv_general_dilated(
            x, w_oihw, window_strides=(1, 1), padding=((1, 1), (1, 1)),
            dimension_numbers=("NCHW", "OIHW", "NCHW"))
        return y + b.reshape(1, -1, 1, 1)

    y = jax.nn.relu(conv(x_nchw, w1, b1))
    y = conv(y, w2, b2)
    return jax.nn.relu(x_nchw + y)


if __name__ == "__main__":
    key = jax.random.PRNGKey(0)
    N, C, H, W = 2, 4, 16, 16

    k_x, k_w1, k_b1, k_w2, k_b2 = jax.random.split(key, 5)
    x = jax.random.normal(k_x, (N, C, H, W), dtype=jnp.float32)

    # Conv2d(C, C, 3, padding=1)-style init, stored (kH, kW, C_in, C_out).
    fan_in = C * 3 * 3
    bound = 1.0 / (fan_in ** 0.5)
    w1 = jax.random.uniform(k_w1, (3, 3, C, C), jnp.float32, -bound, bound)
    b1 = jax.random.uniform(k_b1, (C,), jnp.float32, -bound, bound)
    w2 = jax.random.uniform(k_w2, (3, 3, C, C), jnp.float32, -bound, bound)
    b2 = jax.random.uniform(k_b2, (C,), jnp.float32, -bound, bound)

    out = jax.block_until_ready(residual_block(x, w1, b1, w2, b2))
    ref = jax.block_until_ready(_reference(x, w1, b1, w2, b2))

    assert out.shape == (N, C, H, W)
    assert jnp.allclose(out, ref, atol=1e-3, rtol=1e-3), "mismatch vs reference"

    print("KERNEL_OK")
</pallas_src>

<mosaic_0001>
module attributes {stable_mosaic.version = 11 : i64} {
  func.func @_resblock_kernel(%arg0: i32, %arg1: memref<1x16x64xf32, #tpu.memory_space<vmem>>, %arg2: memref<3x64x64xf32, #tpu.memory_space<vmem>>, %arg3: memref<1x64xf32, #tpu.memory_space<vmem>>, %arg4: memref<3x64x64xf32, #tpu.memory_space<vmem>>, %arg5: memref<1x64xf32, #tpu.memory_space<vmem>>, %arg6: memref<1x16x64xf32, #tpu.memory_space<vmem>>, %arg7: memref<1x18x64xf32, #tpu.memory_space<vmem>>) attributes {dimension_semantics = [#tpu.dimension_semantics<parallel>], iteration_bounds = array<i64: 2>, scalar_prefetch = 0 : i64, scratch_operands = 1 : i64, tpu.core_type = #tpu.core_type<tc>, window_params = [{transform_indices = @transform_0, window_bounds = array<i64: 1, 16, 64>}, {pipeline_mode = #tpu.pipeline_mode<synchronous>, transform_indices = @transform_1, window_bounds = array<i64: 3, 64, 64>}, {pipeline_mode = #tpu.pipeline_mode<synchronous>, transform_indices = @transform_2, window_bounds = array<i64: 1, 64>}, {pipeline_mode = #tpu.pipeline_mode<synchronous>, transform_indices = @transform_3, window_bounds = array<i64: 3, 64, 64>}, {pipeline_mode = #tpu.pipeline_mode<synchronous>, transform_indices = @transform_4, window_bounds = array<i64: 1, 64>}, {transform_indices = @transform_5, window_bounds = array<i64: 1, 16, 64>}]} {
    %cst = arith.constant 0.000000e+00 : f32
    %0 = vector.broadcast %cst : f32 to vector<1x1x64xf32>
    %c0 = arith.constant 0 : index
    %c0_0 = arith.constant 0 : index
    %c0_1 = arith.constant 0 : index
    %1 = vector.load %arg7[%c0, %c0_0, %c0_1] : memref<1x18x64xf32, #tpu.memory_space<vmem>>, vector<1x1x64xf32>
    tpu.vector_store %arg7[%c0, %c0_0, %c0_1], %0 {strides = array<i32>} : memref<1x18x64xf32, #tpu.memory_space<vmem>>, vector<1x1x64xf32>,
    %c0_2 = arith.constant 0 : index
    %c17 = arith.constant 17 : index
    %c0_3 = arith.constant 0 : index
    %2 = vector.load %arg7[%c0_2, %c17, %c0_3] : memref<1x18x64xf32, #tpu.memory_space<vmem>>, vector<1x1x64xf32>
    tpu.vector_store %arg7[%c0_2, %c17, %c0_3], %0 {strides = array<i32>} : memref<1x18x64xf32, #tpu.memory_space<vmem>>, vector<1x1x64xf32>,
    %c0_4 = arith.constant 0 : index
    %c0_5 = arith.constant 0 : index
    %c0_6 = arith.constant 0 : index
    %3 = vector.load %arg1[%c0_4, %c0_5, %c0_6] : memref<1x16x64xf32, #tpu.memory_space<vmem>>, vector<1x16x64xf32>
    %c0_7 = arith.constant 0 : index
    %c1 = arith.constant 1 : index
    %c0_8 = arith.constant 0 : index
    %4 = vector.load %arg7[%c0_7, %c1, %c0_8] : memref<1x18x64xf32, #tpu.memory_space<vmem>>, vector<1x16x64xf32>
    tpu.vector_store %arg7[%c0_7, %c1, %c0_8], %3 {strides = array<i32>} : memref<1x18x64xf32, #tpu.memory_space<vmem>>, vector<1x16x64xf32>,
    %c0_9 = arith.constant 0 : index
    %c0_10 = arith.constant 0 : index
    %5 = vector.load %arg3[%c0_9, %c0_10] : memref<1x64xf32, #tpu.memory_space<vmem>>, vector<1x64xf32>
    %cst_11 = arith.constant 0.000000e+00 : f32
    %6 = vector.broadcast %cst_11 : f32 to vector<16x64xf32>
    %c0_12 = arith.constant 0 : index
    %c0_13 = arith.constant 0 : index
    %c0_14 = arith.constant 0 : index
    %7 = vector.load %arg7[%c0_12, %c0_13, %c0_14] : memref<1x18x64xf32, #tpu.memory_space<vmem>>, vector<1x16x64xf32>
    %8 = vector.shape_cast %7 : vector<1x16x64xf32> to vector<16x64xf32>
    %c0_15 = arith.constant 0 : index
    %c0_16 = arith.constant 0 : index
    %c0_17 = arith.constant 0 : index
    %9 = vector.load %arg2[%c0_15, %c0_16, %c0_17] : memref<3x64x64xf32, #tpu.memory_space<vmem>>, vector<1x64x64xf32>
    %10 = vector.shape_cast %9 : vector<1x64x64xf32> to vector<64x64xf32>
    %cst_18 = arith.constant dense<0.000000e+00> : vector<16x64xf32>
    %11 = tpu.matmul %8, %10, %cst_18 {dimension_numbers = #tpu.dot_dimension_numbers<[1], [0], [0], [1], [0, 0, 1, 1], [], []>} : vector<16x64xf32>, vector<64x64xf32>, vector<16x64xf32> -> vector<16x64xf32>
    %12 = arith.addf %6, %11 : vector<16x64xf32>
    %c0_19 = arith.constant 0 : index
    %c1_20 = arith.constant 1 : index
    %c0_21 = arith.constant 0 : index
    %13 = vector.load %arg7[%c0_19, %c1_20, %c0_21] : memref<1x18x64xf32, #tpu.memory_space<vmem>>, vector<1x16x64xf32>
    %14 = vector.shape_cast %13 : vector<1x16x64xf32> to vector<16x64xf32>
    %c1_22 = arith.constant 1 : index
    %c0_23 = arith.constant 0 : index
    %c0_24 = arith.constant 0 : index
    %15 = vector.load %arg2[%c1_22, %c0_23, %c0_24] : memref<3x64x64xf32, #tpu.memory_space<vmem>>, vector<1x64x64xf32>
    %16 = vector.shape_cast %15 : vector<1x64x64xf32> to vector<64x64xf32>
    %cst_25 = arith.constant dense<0.000000e+00> : vector<16x64xf32>
    %17 = tpu.matmul %14, %16, %cst_25 {dimension_numbers = #tpu.dot_dimension_numbers<[1], [0], [0], [1], [0, 0, 1, 1], [], []>} : vector<16x64xf32>, vector<64x64xf32>, vector<16x64xf32> -> vector<16x64xf32>
    %18 = arith.addf %12, %17 : vector<16x64xf32>
    %c0_26 = arith.constant 0 : index
    %c2 = arith.constant 2 : index
    %c0_27 = arith.constant 0 : index
    %19 = vector.load %arg7[%c0_26, %c2, %c0_27] : memref<1x18x64xf32, #tpu.memory_space<vmem>>, vector<1x16x64xf32>
    %20 = vector.shape_cast %19 : vector<1x16x64xf32> to vector<16x64xf32>
    %c2_28 = arith.constant 2 : index
    %c0_29 = arith.constant 0 : index
    %c0_30 = arith.constant 0 : index
    %21 = vector.load %arg2[%c2_28, %c0_29, %c0_30] : memref<3x64x64xf32, #tpu.memory_space<vmem>>, vector<1x64x64xf32>
    %22 = vector.shape_cast %21 : vector<1x64x64xf32> to vector<64x64xf32>
    %cst_31 = arith.constant dense<0.000000e+00> : vector<16x64xf32>
    %23 = tpu.matmul %20, %22, %cst_31 {dimension_numbers = #tpu.dot_dimension_numbers<[1], [0], [0], [1], [0, 0, 1, 1], [], []>} : vector<16x64xf32>, vector<64x64xf32>, vector<16x64xf32> -> vector<16x64xf32>
    %24 = arith.addf %18, %23 : vector<16x64xf32>
    %25 = vector.broadcast %5 : vector<1x64xf32> to vector<16x64xf32>
    %26 = arith.addf %24, %25 : vector<16x64xf32>
    %27 = vector.shape_cast %26 : vector<16x64xf32> to vector<1x16x64xf32>
    %cst_32 = arith.constant 0.000000e+00 : f32
    %28 = vector.broadcast %cst_32 : f32 to vector<1x16x64xf32>
    %29 = arith.maximumf %27, %28 : vector<1x16x64xf32>
    %c0_33 = arith.constant 0 : index
    %c1_34 = arith.constant 1 : index
    %c0_35 = arith.constant 0 : index
    %30 = vector.load %arg7[%c0_33, %c1_34, %c0_35] : memref<1x18x64xf32, #tpu.memory_space<vmem>>, vector<1x16x64xf32>
    tpu.vector_store %arg7[%c0_33, %c1_34, %c0_35], %29 {strides = array<i32>} : memref<1x18x64xf32, #tpu.memory_space<vmem>>, vector<1x16x64xf32>,
    %c0_36 = arith.constant 0 : index
    %c0_37 = arith.constant 0 : index
    %31 = vector.load %arg5[%c0_36, %c0_37] : memref<1x64xf32, #tpu.memory_space<vmem>>, vector<1x64xf32>
    %cst_38 = arith.constant 0.000000e+00 : f32
    %32 = vector.broadcast %cst_38 : f32 to vector<16x64xf32>
    %c0_39 = arith.constant 0 : index
    %c0_40 = arith.constant 0 : index
    %c0_41 = arith.constant 0 : index
    %33 = vector.load %arg7[%c0_39, %c0_40, %c0_41] : memref<1x18x64xf32, #tpu.memory_space<vmem>>, vector<1x16x64xf32>
    %34 = vector.shape_cast %33 : vector<1x16x64xf32> to vector<16x64xf32>
    %c0_42 = arith.constant 0 : index
    %c0_43 = arith.constant 0 : index
    %c0_44 = arith.constant 0 : index
    %35 = vector.load %arg4[%c0_42, %c0_43, %c0_44] : memref<3x64x64xf32, #tpu.memory_space<vmem>>, vector<1x64x64xf32>
    %36 = vector.shape_cast %35 : vector<1x64x64xf32> to vector<64x64xf32>
    %cst_45 = arith.constant dense<0.000000e+00> : vector<16x64xf32>
    %37 = tpu.matmul %34, %36, %cst_45 {dimension_numbers = #tpu.dot_dimension_numbers<[1], [0], [0], [1], [0, 0, 1, 1], [], []>} : vector<16x64xf32>, vector<64x64xf32>, vector<16x64xf32> -> vector<16x64xf32>
    %38 = arith.addf %32, %37 : vector<16x64xf32>
    %c0_46 = arith.constant 0 : index
    %c1_47 = arith.constant 1 : index
    %c0_48 = arith.constant 0 : index
    %39 = vector.load %arg7[%c0_46, %c1_47, %c0_48] : memref<1x18x64xf32, #tpu.memory_space<vmem>>, vector<1x16x64xf32>
    %40 = vector.shape_cast %39 : vector<1x16x64xf32> to vector<16x64xf32>
    %c1_49 = arith.constant 1 : index
    %c0_50 = arith.constant 0 : index
    %c0_51 = arith.constant 0 : index
    %41 = vector.load %arg4[%c1_49, %c0_50, %c0_51] : memref<3x64x64xf32, #tpu.memory_space<vmem>>, vector<1x64x64xf32>
    %42 = vector.shape_cast %41 : vector<1x64x64xf32> to vector<64x64xf32>
    %cst_52 = arith.constant dense<0.000000e+00> : vector<16x64xf32>
    %43 = tpu.matmul %40, %42, %cst_52 {dimension_numbers = #tpu.dot_dimension_numbers<[1], [0], [0], [1], [0, 0, 1, 1], [], []>} : vector<16x64xf32>, vector<64x64xf32>, vector<16x64xf32> -> vector<16x64xf32>
    %44 = arith.addf %38, %43 : vector<16x64xf32>
    %c0_53 = arith.constant 0 : index
    %c2_54 = arith.constant 2 : index
    %c0_55 = arith.constant 0 : index
    %45 = vector.load %arg7[%c0_53, %c2_54, %c0_55] : memref<1x18x64xf32, #tpu.memory_space<vmem>>, vector<1x16x64xf32>
    %46 = vector.shape_cast %45 : vector<1x16x64xf32> to vector<16x64xf32>
    %c2_56 = arith.constant 2 : index
    %c0_57 = arith.constant 0 : index
    %c0_58 = arith.constant 0 : index
    %47 = vector.load %arg4[%c2_56, %c0_57, %c0_58] : memref<3x64x64xf32, #tpu.memory_space<vmem>>, vector<1x64x64xf32>
    %48 = vector.shape_cast %47 : vector<1x64x64xf32> to vector<64x64xf32>
    %cst_59 = arith.constant dense<0.000000e+00> : vector<16x64xf32>
    %49 = tpu.matmul %46, %48, %cst_59 {dimension_numbers = #tpu.dot_dimension_numbers<[1], [0], [0], [1], [0, 0, 1, 1], [], []>} : vector<16x64xf32>, vector<64x64xf32>, vector<16x64xf32> -> vector<16x64xf32>
    %50 = arith.addf %44, %49 : vector<16x64xf32>
    %51 = vector.broadcast %31 : vector<1x64xf32> to vector<16x64xf32>
    %52 = arith.addf %50, %51 : vector<16x64xf32>
    %53 = vector.shape_cast %52 : vector<16x64xf32> to vector<1x16x64xf32>
    %54 = arith.addf %3, %53 : vector<1x16x64xf32>
    %cst_60 = arith.constant 0.000000e+00 : f32
    %55 = vector.broadcast %cst_60 : f32 to vector<1x16x64xf32>
    %56 = arith.maximumf %54, %55 : vector<1x16x64xf32>
    %c0_61 = arith.constant 0 : index
    %c0_62 = arith.constant 0 : index
    %c0_63 = arith.constant 0 : index
    %57 = vector.load %arg6[%c0_61, %c0_62, %c0_63] : memref<1x16x64xf32, #tpu.memory_space<vmem>>, vector<1x16x64xf32>
    tpu.vector_store %arg6[%c0_61, %c0_62, %c0_63], %56 {strides = array<i32>} : memref<1x16x64xf32, #tpu.memory_space<vmem>>, vector<1x16x64xf32>,
    return
  }
  func.func @transform_0(%arg0: i32) -> (i32, i32, i32) {
    %c0_i32 = arith.constant 0 : i32
    %c0_i32_0 = arith.constant 0 : i32
    %c0_i32_1 = arith.constant 0 : i32
    return %arg0, %c0_i32, %c0_i32_0 : i32, i32, i32
  }
  func.func @transform_1(%arg0: i32) -> (i32, i32, i32) {
    %c0_i32 = arith.constant 0 : i32
    %c0_i32_0 = arith.constant 0 : i32
    %c0_i32_1 = arith.constant 0 : i32
    %c0_i32_2 = arith.constant 0 : i32
    return %c0_i32, %c0_i32_0, %c0_i32_1 : i32, i32, i32
  }
  func.func @transform_2(%arg0: i32) -> (i32, i32) {
    %c0_i32 = arith.constant 0 : i32
    %c0_i32_0 = arith.constant 0 : i32
    %c0_i32_1 = arith.constant 0 : i32
    return %c0_i32, %c0_i32_0 : i32, i32
  }
  func.func @transform_3(%arg0: i32) -> (i32, i32, i32) {
    %c0_i32 = arith.constant 0 : i32
    %c0_i32_0 = arith.constant 0 : i32
    %c0_i32_1 = arith.constant 0 : i32
    %c0_i32_2 = arith.constant 0 : i32
    return %c0_i32, %c0_i32_0, %c0_i32_1 : i32, i32, i32
  }
  func.func @transform_4(%arg0: i32) -> (i32, i32) {
    %c0_i32 = arith.constant 0 : i32
    %c0_i32_0 = arith.constant 0 : i32
    %c0_i32_1 = arith.constant 0 : i32
    return %c0_i32, %c0_i32_0 : i32, i32
  }
  func.func @transform_5(%arg0: i32) -> (i32, i32, i32) {
    %c0_i32 = arith.constant 0 : i32
    %c0_i32_0 = arith.constant 0 : i32
    %c0_i32_1 = arith.constant 0 : i32
    return %arg0, %c0_i32, %c0_i32_0 : i32, i32, i32
  }
}

</mosaic_0001>

<llo_original>
// kernel: tpu_custom_call.1
$region0: #{tpu_custom_call.1}
  #allocation0 [shape = 'u32[]', space=smem, size = 0x4, offset = 0x4, fixed_abs, tag = 'smem constant byte address 0x4 - core index']
  #allocation1 [shape = 'u32[144,128]{1,0:T(1,128)}', space=vmem, size = 0x12000, scoped, tag = 'internal scratch']
  #allocation2 [shape = 'f32[1,18,64]{2,1,0:T(8,128)}', space=vmem, size = 0x3000, scoped, tag = 'scratch operand']
  %s0 = inlined_call_operand.hbm [shape: f32[2,16,64], index: 0, kind: input, shape index: {}]
  %s1 = inlined_call_operand.hbm [shape: f32[3,64,64], index: 1, kind: input, shape index: {}]
  %s2 = inlined_call_operand.vmem [shape: f32[1,64], index: 2, kind: input, shape index: {}]
  %s3 = inlined_call_operand.hbm [shape: f32[3,64,64], index: 3, kind: input, shape index: {}]
  %s4 = inlined_call_operand.vmem [shape: f32[1,64], index: 4, kind: input, shape index: {}]
  %s5 = inlined_call_operand.hbm [shape: f32[2,16,64], index: 5, kind: output, shape index: {}]
  %s6 = sld [smem:[#allocation0]]
  $region65: #{tpu_custom_call.1} parent=0
    _
  %s8 = ssub.s32 1, %s6
  %s9 = scalar_select 0, %s8, %s6
  $region1: #{tpu_custom_call.1} parent=0
    #allocation3 [shape = 'u8[16384]{0}', space=vmem, size = 0x4000, scoped, tag = 'input window, operand 0']
    #allocation4 [shape = 's32[2]{0}', space=sflag, size = 0x8, scoped, tag = 'scoped memory for tpu_custom_call.1']
    #allocation5 [shape = 's32[2]{0}', space=sflag, size = 0x8, scoped, tag = 'scoped memory for tpu_custom_call.1']
    #allocation6 [shape = 'u8[98304]{0}', space=vmem, size = 0x18000, scoped, tag = 'input window, operand 1, single buffered']
    #allocation7 [shape = 's32[1]{0}', space=sflag, size = 0x4, scoped, tag = 'scoped memory for tpu_custom_call.1']
    #allocation8 [shape = 'u8[98304]{0}', space=vmem, size = 0x18000, scoped, tag = 'input window, operand 3, single buffered']
    #allocation9 [shape = 'u8[16384]{0}', space=vmem, size = 0x4000, scoped, tag = 'output window, operand 0']
    %10 = vsyncpa [#allocation4], 0
    %s11 = scalar_lea.sflag [#allocation4], 1
    %12 = vsyncpa %s11, 0
    %13 = vsyncpa [#allocation7], 0
    %14 = vsyncpa [#allocation5], 0
    %s15 = scalar_lea.sflag [#allocation5], 1
    %16 = vsyncpa %s15, 0
    loop: start=0, step=1, limit=4
    $region2: #{tpu_custom_call.1} parent=1 // loop_pre_header
      _
    $region3: #{tpu_custom_call.1} parent=1 // loop_header
      %s18 = sphi 0, %s22
      %p19 = scmp.ge.s32.totalorder %s18, 4
      %s28 = sphi 0, %s30
      %s31 = sphi 0, %s28
      %s32 = sphi 0, %s31
      %s48 = sphi 0, %s32
      %s52 = sphi 0, %s52
      %s54 = sphi 0, %s52
      %s55 = sphi 0, %s54
      %s69 = sphi 0, %s55
      %s73 = sphi 0, %s73
      %s75 = sphi 0, %s73
      %s76 = sphi 0, %s75
      %s90 = sphi 0, %s76
      %s94 = sphi 0, %s94
      %s96 = sphi 0, %s94
      %s97 = sphi 0, %s96
      %s111 = sphi 0, %s97
      %s115 = sphi 0, %s115
      %s117 = sphi 0, %s115
      %s118 = sphi 0, %s117
      %s132 = sphi 0, %s118
      %s138 = sphi 0, %s140
      %s141 = sphi 0, %s138
      %s142 = sphi 0, %s141
      %s158 = sphi 0, %s142
    $region4: #{tpu_custom_call.1} parent=1 // loop_header_branch
      %21 = sbr.rel (%p19) target = $region8
    $region5: #{tpu_custom_call.1} parent=1 // loop_body
      %s23 = ssub.s32 %s18, 1
      %s24 = ssub.s32 %s18, 2
      %s25 = sadd.s32 %s18, 1
      %s26 = ssub.s32 %s18, %s25
      %p27 = scmp.eq.s32.totalorder %s26, 0
      %s29 = sadd.s32 %s28, 1
      %s30 = scalar_select %p27, %s28, %s29
      %p33 = pneg %p27
      %p34 = scmp.eq.s32.totalorder %s18, 1
      %p35 = por %p33, %p34
      %p36 = scmp.ne.s32.totalorder %s28, %s31
      %p37 = scmp.eq.s32.totalorder %s18, 0
      %p38 = por %p36, %p37
      %p39 = scmp.ne.s32.totalorder %s28, %s31
      %p40 = scmp.eq.s32.totalorder %s23, 1
      %p41 = por %p39, %p40
      %p42 = scmp.ne.s32.totalorder %s31, %s32
      %p43 = scmp.eq.s32.totalorder %s23, 0
      %p44 = por %p42, %p43
      %p45 = scmp.ne.s32.totalorder %s31, %s32
      %p46 = scmp.eq.s32.totalorder %s24, 1
      %p47 = por %p45, %p46
      %p49 = scmp.ne.s32.totalorder %s32, %s48
      %p50 = scmp.eq.s32.totalorder %s24, 0
      %p51 = por %p49, %p50
      %s53 = sadd.s32 %s52, 1
      %p56 = scmp.eq.s32.totalorder %s18, 1
      %p57 = scmp.ne.s32.totalorder %s52, %s54
      %p58 = scmp.eq.s32.totalorder %s18, 0
      %p59 = por %p57, %p58
      %p60 = scmp.ne.s32.totalorder %s52, %s54
      %p61 = scmp.eq.s32.totalorder %s23, 1
      %p62 = por %p60, %p61
      %p63 = scmp.ne.s32.totalorder %s54, %s55
      %p64 = scmp.eq.s32.totalorder %s23, 0
      %p65 = por %p63, %p64
      %p66 = scmp.ne.s32.totalorder %s54, %s55
      %p67 = scmp.eq.s32.totalorder %s24, 1
      %p68 = por %p66, %p67
      %p70 = scmp.ne.s32.totalorder %s55, %s69
      %p71 = scmp.eq.s32.totalorder %s24, 0
      %p72 = por %p70, %p71
      %s74 = sadd.s32 %s73, 1
      %p77 = scmp.eq.s32.totalorder %s18, 1
      %p78 = scmp.ne.s32.totalorder %s73, %s75
      %p79 = scmp.eq.s32.totalorder %s18, 0
      %p80 = por %p78, %p79
      %p81 = scmp.ne.s32.totalorder %s73, %s75
      %p82 = scmp.eq.s32.totalorder %s23, 1
      %p83 = por %p81, %p82
      %p84 = scmp.ne.s32.totalorder %s75, %s76
      %p85 = scmp.eq.s32.totalorder %s23, 0
      %p86 = por %p84, %p85
      %p87 = scmp.ne.s32.totalorder %s75, %s76
      %p88 = scmp.eq.s32.totalorder %s24, 1
      %p89 = por %p87, %p88
      %p91 = scmp.ne.s32.totalorder %s76, %s90
      %p92 = scmp.eq.s32.totalorder %s24, 0
      %p93 = por %p91, %p92
      %s95 = sadd.s32 %s94, 1
      %p98 = scmp.eq.s32.totalorder %s18, 1
      %p99 = scmp.ne.s32.totalorder %s94, %s96
      %p100 = scmp.eq.s32.totalorder %s18, 0
      %p101 = por %p99, %p100
      %p102 = scmp.ne.s32.totalorder %s94, %s96
      %p103 = scmp.eq.s32.totalorder %s23, 1
      %p104 = por %p102, %p103
      %p105 = scmp.ne.s32.totalorder %s96, %s97
      %p106 = scmp.eq.s32.totalorder %s23, 0
      %p107 = por %p105, %p106
      %p108 = scmp.ne.s32.totalorder %s96, %s97
      %p109 = scmp.eq.s32.totalorder %s24, 1
      %p110 = por %p108, %p109
      %p112 = scmp.ne.s32.totalorder %s97, %s111
      %p113 = scmp.eq.s32.totalorder %s24, 0
      %p114 = por %p112, %p113
      %s116 = sadd.s32 %s115, 1
      %p119 = scmp.eq.s32.totalorder %s18, 1
      %p120 = scmp.ne.s32.totalorder %s115, %s117
      %p121 = scmp.eq.s32.totalorder %s18, 0
      %p122 = por %p120, %p121
      %p123 = scmp.ne.s32.totalorder %s115, %s117
      %p124 = scmp.eq.s32.totalorder %s23, 1
      %p125 = por %p123, %p124
      %p126 = scmp.ne.s32.totalorder %s117, %s118
      %p127 = scmp.eq.s32.totalorder %s23, 0
      %p128 = por %p126, %p127
      %p129 = scmp.ne.s32.totalorder %s117, %s118
      %p130 = scmp.eq.s32.totalorder %s24, 1
      %p131 = por %p129, %p130
      %p133 = scmp.ne.s32.totalorder %s118, %s132
      %p134 = scmp.eq.s32.totalorder %s24, 0
      %p135 = por %p133, %p134
      %s136 = ssub.s32 %s18, %s25
      %p137 = scmp.eq.s32.totalorder %s136, 0
      %s139 = sadd.s32 %s138, 1
      %s140 = scalar_select %p137, %s138, %s139
      %p143 = pneg %p137
      %p144 = scmp.eq.s32.totalorder %s18, 1
      %p145 = por %p143, %p144
      %p146 = scmp.ne.s32.totalorder %s138, %s141
      %p147 = scmp.eq.s32.totalorder %s18, 0
      %p148 = por %p146, %p147
      %p149 = scmp.ne.s32.totalorder %s138, %s141
      %p150 = scmp.eq.s32.totalorder %s23, 1
      %p151 = por %p149, %p150
      %p152 = scmp.ne.s32.totalorder %s141, %s142
      %p153 = scmp.eq.s32.totalorder %s23, 0
      %p154 = por %p152, %p153
      %p155 = scmp.ne.s32.totalorder %s141, %s142
      %p156 = scmp.eq.s32.totalorder %s24, 1
      %p157 = por %p155, %p156
      %p159 = scmp.ne.s32.totalorder %s142, %s158
      %p160 = scmp.eq.s32.totalorder %s24, 0
      %p161 = por %p159, %p160
      %p162 = scmp.le.s32.totalorder 1, %s18
      %p163 = scmp.lt.s32.totalorder %s18, 3
      %p164 = pnand %p162, %p163
      %p165 = pneg %p164
      // Predicated region
      $region9: #{tpu_custom_call.1} parent=5 // pred_check
        _
      $region10: #{tpu_custom_call.1} parent=5 // pred_check_branch
        %167 = sbr.rel (%p164) target = $region12
      $region11: #{tpu_custom_call.1} parent=5 // pred_region
        %s168 = ssub.s32 %s18, 1
        // Predicated region
        $region13: #{tpu_custom_call.1} parent=11 // pred_check
          %p169 = pneg %p65
        $region14: #{tpu_custom_call.1} parent=11 // pred_check_branch
          %171 = sbr.rel (%p169) target = $region16
        $region15: #{tpu_custom_call.1} parent=11 // pred_region
          %s173 = ssub.s32 3072, 3072
          %174 = vsyncadd [#allocation7], %s173
          %s175 = sshll.u32 [#allocation6], 4
          %s176 = int_to_ptr.vmem [resolvable:$true] %s175
          %181 = dma.hbm_to_vmem [thread:$0]  %s1, 3072, %s176, [#allocation7], 128, 128, 8
        $region16: #{tpu_custom_call.1} parent=11 // pred_fallthru
          _
        // Predicated region
        $region17: #{tpu_custom_call.1} parent=11 // pred_check
          %p182 = pneg %p86
        $region18: #{tpu_custom_call.1} parent=11 // pred_check_branch
          %184 = sbr.rel (%p182) target = $region20
        $region19: #{tpu_custom_call.1} parent=11 // pred_region
          _
        $region20: #{tpu_custom_call.1} parent=11 // pred_fallthru
          _
        // Predicated region
        $region21: #{tpu_custom_call.1} parent=11 // pred_check
          %p185 = pneg %p107
        $region22: #{tpu_custom_call.1} parent=11 // pred_check_branch
          %187 = sbr.rel (%p185) target = $region24
        $region23: #{tpu_custom_call.1} parent=11 // pred_region
          %s189 = ssub.s32 3072, 3072
          %190 = vsyncadd [#allocation7], %s189
          %s191 = sshll.u32 [#allocation8], 4
          %s192 = int_to_ptr.vmem [resolvable:$true] %s191
          %197 = dma.hbm_to_vmem [thread:$0]  %s3, 3072, %s192, [#allocation7], 128, 128, 8
        $region24: #{tpu_custom_call.1} parent=11 // pred_fallthru
          _
        // Predicated region
        $region25: #{tpu_custom_call.1} parent=11 // pred_check
          %p198 = pneg %p128
        $region26: #{tpu_custom_call.1} parent=11 // pred_check_branch
          %200 = sbr.rel (%p198) target = $region28
        $region27: #{tpu_custom_call.1} parent=11 // pred_region
          _
        $region28: #{tpu_custom_call.1} parent=11 // pred_fallthru
          _
      $region12: #{tpu_custom_call.1} parent=5 // pred_fallthru
        _
      %p201 = scmp.lt.s32.totalorder %s18, 2
      // Predicated region
      $region29: #{tpu_custom_call.1} parent=5 // pred_check
        %p202 = pneg %p201
      $region30: #{tpu_custom_call.1} parent=5 // pred_check_branch
        %204 = sbr.rel (%p202) target = $region32
      $region31: #{tpu_custom_call.1} parent=5 // pred_region
        // Predicated region
        $region33: #{tpu_custom_call.1} parent=31 // pred_check
          %p205 = pneg %p38
        $region34: #{tpu_custom_call.1} parent=31 // pred_check_branch
          %207 = sbr.rel (%p205) target = $region36
        $region35: #{tpu_custom_call.1} parent=31 // pred_region
          %s208 = sand.u32 %s28, 1
          %s209 = scalar_lea.sflag [#allocation4], %s208
          %s210 = sand.u32 %s28, 1
          %s211 = smul.addr %s210, 16
          %s212 = scalar_lea.vmem [#allocation3], %s211
          %s214 = ssub.s32 256, 256
          %215 = vsyncadd %s209, %s214
          %s216 = smul.addr %s18, 2
          %s217 = smul.addr %s216, 128
          %s218 = scalar_lea.hbm %s0, %s217
          %s219 = sshll.u32 %s212, 4
          %s220 = int_to_ptr.vmem [resolvable:$true] %s219
          %225 = dma.hbm_to_vmem [thread:$0]  %s218, 256, %s220, %s209, 128, 128, 8
        $region36: #{tpu_custom_call.1} parent=31 // pred_fallthru
          _
      $region32: #{tpu_custom_call.1} parent=5 // pred_fallthru
        _
      %p226 = scmp.le.s32.totalorder 1, %s18
      %p227 = scmp.lt.s32.totalorder %s18, 3
      %p228 = pnand %p226, %p227
      %p229 = pneg %p228
      // Predicated region
      $region37: #{tpu_custom_call.1} parent=5 // pred_check
        _
      $region38: #{tpu_custom_call.1} parent=5 // pred_check_branch
        %231 = sbr.rel (%p228) target = $region40
      $region39: #{tpu_custom_call.1} parent=5 // pred_region
        %s232 = ssub.s32 %s18, 1
        %s233 = sand.u32 %s31, 1
        %s234 = scalar_lea.sflag [#allocation4], %s233
        %s235 = sand.u32 %s31, 1
        %s236 = smul.addr %s235, 16
        %s237 = scalar_lea.vmem [#allocation3], %s236
        // Predicated region
        $region41: #{tpu_custom_call.1} parent=39 // pred_check
          %p238 = pneg %p44
        $region42: #{tpu_custom_call.1} parent=39 // pred_check_branch
          %240 = sbr.rel (%p238) target = $region44
        $region43: #{tpu_custom_call.1} parent=39 // pred_region
          %241 = dma.done %s234, 256
        $region44: #{tpu_custom_call.1} parent=39 // pred_fallthru
          _
        // Predicated region
        $region45: #{tpu_custom_call.1} parent=39 // pred_check
          %p242 = pneg %p65
        $region46: #{tpu_custom_call.1} parent=39 // pred_check_branch
          %244 = sbr.rel (%p242) target = $region48
        $region47: #{tpu_custom_call.1} parent=39 // pred_region
          %245 = dma.done [#allocation7], 3072
        $region48: #{tpu_custom_call.1} parent=39 // pred_fallthru
          _
        // Predicated region
        $region49: #{tpu_custom_call.1} parent=39 // pred_check
          %p246 = pneg %p107
        $region50: #{tpu_custom_call.1} parent=39 // pred_check_branch
          %248 = sbr.rel (%p246) target = $region52
        $region51: #{tpu_custom_call.1} parent=39 // pred_region
          %249 = dma.done [#allocation7], 3072
        $region52: #{tpu_custom_call.1} parent=39 // pred_fallthru
          _
        %s250 = sand.u32 %s31, 1
        %s251 = scalar_lea.sflag [#allocation4], %s250
        %s252 = sand.u32 %s31, 1
        %s253 = smul.addr %s252, 16
        %s254 = scalar_lea.vmem [#allocation3], %s253
        %p255 = pneg %p44
        %p256 = pneg %p41
        %p257 = pneg %p65
        %p258 = pneg %p62
        %p259 = pneg %p86
        %p260 = pneg %p83
        %p261 = pneg %p107
        %p262 = pneg %p104
        %p263 = pneg %p128
        %p264 = pneg %p125
        %p265 = pneg %p154
        %p266 = pneg %p151
        %s267 = sand.u32 %s141, 1
        %s268 = scalar_lea.sflag [#allocation5], %s267
        %s269 = sand.u32 %s141, 1
        %s270 = smul.addr %s269, 16
        %s271 = scalar_lea.vmem [#allocation9], %s270
        %vm272 = vcmask 516096
        %273 = vst.msk [vmem:[#allocation2] sm:$0x1] %vm272, 0.0
        %274 = vst.msk [vmem:[#allocation2 + $0x11] sm:$0x1] %vm272, 0.0
        %v275 = vld [vmem:[%s237] sm:$0xff]
        %v276 = vld [vmem:[%s237 + $0x8] sm:$0xff]
        %vm277 = vcmask 523264
        %278 = vst.msk [vmem:[#allocation2 + $0x1] sm:$0xff] %vm277, %v275
        %279 = vst.msk [vmem:[#allocation2 + $0x9] sm:$0xff] %vm277, %v276
        %v280 = vld [vmem:[%s2] sm:$0x1]
        %v281 = vld [vmem:[#allocation2] sm:$0xff]
        %v282 = vld [vmem:[#allocation2 + $0x8] sm:$0xff]
        %v283 = vld [vmem:[#allocation6] sm:$0xff]
        %v284 = vld [vmem:[#allocation6 + $0x8] sm:$0xff]
        %v285 = vld [vmem:[#allocation6 + $0x10] sm:$0xff]
        %v286 = vld [vmem:[#allocation6 + $0x18] sm:$0xff]
        %v287 = vld [vmem:[#allocation6 + $0x20] sm:$0xff]
        %v288 = vld [vmem:[#allocation6 + $0x28] sm:$0xff]
        %v289 = vld [vmem:[#allocation6 + $0x30] sm:$0xff]
        %v290 = vld [vmem:[#allocation6 + $0x38] sm:$0xff]
        %v291 = vld [vmem:[#allocation2 + $0x1] sm:$0xff]
        %v292 = vld [vmem:[#allocation2 + $0x9] sm:$0xff]
        %s293 = scalar_lea.vmem [#allocation6], 64
        %v294 = vld [vmem:[%s293] sm:$0xff]
        %v295 = vld [vmem:[%s293 + $0x8] sm:$0xff]
        %v296 = vld [vmem:[%s293 + $0x10] sm:$0xff]
        %v297 = vld [vmem:[%s293 + $0x18] sm:$0xff]
        %v298 = vld [vmem:[%s293 + $0x20] sm:$0xff]
        %v299 = vld [vmem:[%s293 + $0x28] sm:$0xff]
        %v300 = vld [vmem:[%s293 + $0x30] sm:$0xff]
        %v301 = vld [vmem:[%s293 + $0x38] sm:$0xff]
        %v303 = vsel %vm277, %v291, 0
        %v306 = vsel %vm277, %v292, 0
        %308 = vmatprep.subr.mxu0 0.0
        %309 = vmatpush1.msra.mxu0 %v294
        %310 = vmatprep.subr.mxu0 0.0
        %311 = vmatpush1.msra.mxu0 %v295
        %312 = vmatprep.subr.mxu0 0.0
        %313 = vmatpush1.msra.mxu0 %v296
        %314 = vmatprep.subr.mxu0 0.0
        %315 = vmatpush1.msra.mxu0 %v297
        %316 = vmatprep.subr.mxu0 0.0
        %317 = vmatpush1.msra.mxu0 %v298
        %318 = vmatprep.subr.mxu0 0.0
        %319 = vmatpush1.msra.mxu0 %v299
        %320 = vmatprep.subr.mxu0 0.0
        %321 = vmatpush1.msra.mxu0 %v300
        %322 = vmatprep.subr.mxu0 0.0
        %323 = vmatpush1.msra.mxu0 %v301
        %324 = vmatprep.subr.mxu0 0.0
        %325 = vmatpush1.msra.mxu0 0.0
        %326 = vmatprep.subr.mxu0 0.0
        %327 = vmatpush1.msra.mxu0 0.0
        %328 = vmatprep.subr.mxu0 0.0
        %329 = vmatpush1.msra.mxu0 0.0
        %330 = vmatprep.subr.mxu0 0.0
        %331 = vmatpush1.msra.mxu0 0.0
        %332 = vmatprep.subr.mxu0 0.0
        %333 = vmatpush1.msra.mxu0 0.0
        %334 = vmatprep.subr.mxu0 0.0
        %335 = vmatpush1.msra.mxu0 0.0
        %336 = vmatprep.subr.mxu0 0.0
        %337 = vmatpush1.msra.mxu0 0.0
        %338 = vmatprep.subr.mxu0 0.0
        %339 = vmatpush1.msra.mxu0 0.0
        %340 = vmatprep.subr.mxu0 0.0
        %341 = vmatpush1.msra.mxu0 0.0
        %342 = vmatprep.subr.mxu0 0.0
        %343 = vmatpush1.msra.mxu0 0.0
        %344 = vmatprep.subr.mxu0 0.0
        %345 = vmatpush1.msra.mxu0 0.0
        %346 = vmatprep.subr.mxu0 0.0
        %347 = vmatpush1.msra.mxu0 0.0
        %348 = vmatprep.subr.mxu0 0.0
        %349 = vmatpush1.msra.mxu0 0.0
        %350 = vmatprep.subr.mxu0 0.0
        %351 = vmatpush1.msra.mxu0 0.0
        %352 = vmatprep.subr.mxu0 0.0
        %353 = vmatpush1.msra.mxu0 0.0
        %354 = vmatprep.subr.mxu0 0.0
        %355 = vmatpush1.msra.mxu0 0.0
        %356 = vmatprep.subr.mxu0 0.0
        %357 = vmatpush1.msra.mxu0 0.0
        %358 = vmatprep.subr.mxu0 0.0
        %359 = vmatpush1.msra.mxu0 0.0
        %360 = vmatprep.subr.mxu0 0.0
        %361 = vmatpush1.msra.mxu0 0.0
        %362 = vmatprep.subr.mxu0 0.0
        %363 = vmatpush1.msra.mxu0 0.0
        %364 = vmatprep.subr.mxu0 0.0
        %365 = vmatpush1.msra.mxu0 0.0
        %366 = vmatprep.subr.mxu0 0.0
        %367 = vmatpush1.msra.mxu0 0.0
        %368 = vmatprep.subr.mxu0 0.0
        %369 = vmatpush1.msra.mxu0 0.0
        %370 = vmatprep.subr.mxu0 0.0
        %371 = vmatpush1.msra.mxu0 0.0
        %372 = vmatprep.mubr.f32.mxu0 0.0
        %373 = vmatmul.mubr.f32.gmra.mrb[0].mxu0 %v303
        %v374 = vpop.f32.mrb[0].mxu0
        %v375 = vadd.f32 0.0, %v374
        %v376 = vpop.f32.mrb[0].mxu0
        %377 = vmatprep.mubr.f32.mxu0 0.0
        %378 = vmatmul.mubr.f32.gmra.mrb[0].mxu0 %v306
        %v379 = vpop.f32.mrb[0].mxu0
        %v380 = vadd.f32 0.0, %v379
        %v381 = vpop.f32.mrb[0].mxu0
        %382 = vdwg.mxu0
        %v384 = vsel %vm277, %v281, 0
        %v387 = vsel %vm277, %v282, 0
        %389 = vmatprep.subr.mxu0 0.0
        %390 = vmatpush1.msra.mxu0 %v283
        %391 = vmatprep.subr.mxu0 0.0
        %392 = vmatpush1.msra.mxu0 %v284
        %393 = vmatprep.subr.mxu0 0.0
        %394 = vmatpush1.msra.mxu0 %v285
        %395 = vmatprep.subr.mxu0 0.0
        %396 = vmatpush1.msra.mxu0 %v286
        %397 = vmatprep.subr.mxu0 0.0
        %398 = vmatpush1.msra.mxu0 %v287
        %399 = vmatprep.subr.mxu0 0.0
        %400 = vmatpush1.msra.mxu0 %v288
        %401 = vmatprep.subr.mxu0 0.0
        %402 = vmatpush1.msra.mxu0 %v289
        %403 = vmatprep.subr.mxu0 0.0
        %404 = vmatpush1.msra.mxu0 %v290
        %405 = vmatprep.subr.mxu0 0.0
        %406 = vmatpush1.msra.mxu0 0.0
        %407 = vmatprep.subr.mxu0 0.0
        %408 = vmatpush1.msra.mxu0 0.0
        %409 = vmatprep.subr.mxu0 0.0
        %410 = vmatpush1.msra.mxu0 0.0
        %411 = vmatprep.subr.mxu0 0.0
        %412 = vmatpush1.msra.mxu0 0.0
        %413 = vmatprep.subr.mxu0 0.0
        %414 = vmatpush1.msra.mxu0 0.0
        %415 = vmatprep.subr.mxu0 0.0
        %416 = vmatpush1.msra.mxu0 0.0
        %417 = vmatprep.subr.mxu0 0.0
        %418 = vmatpush1.msra.mxu0 0.0
        %419 = vmatprep.subr.mxu0 0.0
        %420 = vmatpush1.msra.mxu0 0.0
        %421 = vmatprep.subr.mxu0 0.0
        %422 = vmatpush1.msra.mxu0 0.0
        %423 = vmatprep.subr.mxu0 0.0
        %424 = vmatpush1.msra.mxu0 0.0
        %425 = vmatprep.subr.mxu0 0.0
        %426 = vmatpush1.msra.mxu0 0.0
        %427 = vmatprep.subr.mxu0 0.0
        %428 = vmatpush1.msra.mxu0 0.0
        %429 = vmatprep.subr.mxu0 0.0
        %430 = vmatpush1.msra.mxu0 0.0
        %431 = vmatprep.subr.mxu0 0.0
        %432 = vmatpush1.msra.mxu0 0.0
        %433 = vmatprep.subr.mxu0 0.0
        %434 = vmatpush1.msra.mxu0 0.0
        %435 = vmatprep.subr.mxu0 0.0
        %436 = vmatpush1.msra.mxu0 0.0
        %437 = vmatprep.subr.mxu0 0.0
        %438 = vmatpush1.msra.mxu0 0.0
        %439 = vmatprep.subr.mxu0 0.0
        %440 = vmatpush1.msra.mxu0 0.0
        %441 = vmatprep.subr.mxu0 0.0
        %442 = vmatpush1.msra.mxu0 0.0
        %443 = vmatprep.subr.mxu0 0.0
        %444 = vmatpush1.msra.mxu0 0.0
        %445 = vmatprep.subr.mxu0 0.0
        %446 = vmatpush1.msra.mxu0 0.0
        %447 = vmatprep.subr.mxu0 0.0
        %448 = vmatpush1.msra.mxu0 0.0
        %449 = vmatprep.subr.mxu0 0.0
        %450 = vmatpush1.msra.mxu0 0.0
        %451 = vmatprep.subr.mxu0 0.0
        %452 = vmatpush1.msra.mxu0 0.0
        %453 = vmatprep.mubr.f32.mxu0 0.0
        %454 = vmatmul.mubr.f32.gmra.mrb[0].mxu0 %v384
        %v455 = vpop.f32.mrb[0].mxu0
        %v456 = vadd.f32 %v375, %v455
        %v457 = vpop.f32.mrb[0].mxu0
        %458 = vmatprep.mubr.f32.mxu0 0.0
        %459 = vmatmul.mubr.f32.gmra.mrb[0].mxu0 %v387
        %v460 = vpop.f32.mrb[0].mxu0
        %v461 = vadd.f32 %v380, %v460
        %v462 = vpop.f32.mrb[0].mxu0
        %463 = vdwg.mxu0
        %v464 = vld [vmem:[#allocation2 + $0x2] sm:$0xff]
        %v465 = vld [vmem:[#allocation2 + $0xa] sm:$0xff]
        %s466 = scalar_lea.vmem [#allocation6], 128
        %v467 = vld [vmem:[%s466] sm:$0xff]
        %v468 = vld [vmem:[%s466 + $0x8] sm:$0xff]
        %v469 = vld [vmem:[%s466 + $0x10] sm:$0xff]
        %v470 = vld [vmem:[%s466 + $0x18] sm:$0xff]
        %v471 = vld [vmem:[%s466 + $0x20] sm:$0xff]
        %v472 = vld [vmem:[%s466 + $0x28] sm:$0xff]
        %v473 = vld [vmem:[%s466 + $0x30] sm:$0xff]
        %v474 = vld [vmem:[%s466 + $0x38] sm:$0xff]
        %v476 = vsel %vm277, %v464, 0
        %v479 = vsel %vm277, %v465, 0
        %481 = vmatprep.subr.mxu0 0.0
        %482 = vmatpush1.msra.mxu0 %v467
        %483 = vmatprep.subr.mxu0 0.0
        %484 = vmatpush1.msra.mxu0 %v468
        %485 = vmatprep.subr.mxu0 0.0
        %486 = vmatpush1.msra.mxu0 %v469
        %487 = vmatprep.subr.mxu0 0.0
        %488 = vmatpush1.msra.mxu0 %v470
        %489 = vmatprep.subr.mxu0 0.0
        %490 = vmatpush1.msra.mxu0 %v471
        %491 = vmatprep.subr.mxu0 0.0
        %492 = vmatpush1.msra.mxu0 %v472
        %493 = vmatprep.subr.mxu0 0.0
        %494 = vmatpush1.msra.mxu0 %v473
        %495 = vmatprep.subr.mxu0 0.0
        %496 = vmatpush1.msra.mxu0 %v474
        %497 = vmatprep.subr.mxu0 0.0
        %498 = vmatpush1.msra.mxu0 0.0
        %499 = vmatprep.subr.mxu0 0.0
        %500 = vmatpush1.msra.mxu0 0.0
        %501 = vmatprep.subr.mxu0 0.0
        %502 = vmatpush1.msra.mxu0 0.0
        %503 = vmatprep.subr.mxu0 0.0
        %504 = vmatpush1.msra.mxu0 0.0
        %505 = vmatprep.subr.mxu0 0.0
        %506 = vmatpush1.msra.mxu0 0.0
        %507 = vmatprep.subr.mxu0 0.0
        %508 = vmatpush1.msra.mxu0 0.0
        %509 = vmatprep.subr.mxu0 0.0
        %510 = vmatpush1.msra.mxu0 0.0
        %511 = vmatprep.subr.mxu0 0.0
        %512 = vmatpush1.msra.mxu0 0.0
        %513 = vmatprep.subr.mxu0 0.0
        %514 = vmatpush1.msra.mxu0 0.0
        %515 = vmatprep.subr.mxu0 0.0
        %516 = vmatpush1.msra.mxu0 0.0
        %517 = vmatprep.subr.mxu0 0.0
        %518 = vmatpush1.msra.mxu0 0.0
        %519 = vmatprep.subr.mxu0 0.0
        %520 = vmatpush1.msra.mxu0 0.0
        %521 = vmatprep.subr.mxu0 0.0
        %522 = vmatpush1.msra.mxu0 0.0
        %523 = vmatprep.subr.mxu0 0.0
        %524 = vmatpush1.msra.mxu0 0.0
        %525 = vmatprep.subr.mxu0 0.0
        %526 = vmatpush1.msra.mxu0 0.0
        %527 = vmatprep.subr.mxu0 0.0
        %528 = vmatpush1.msra.mxu0 0.0
        %529 = vmatprep.subr.mxu0 0.0
        %530 = vmatpush1.msra.mxu0 0.0
        %531 = vmatprep.subr.mxu0 0.0
        %532 = vmatpush1.msra.mxu0 0.0
        %533 = vmatprep.subr.mxu0 0.0
        %534 = vmatpush1.msra.mxu0 0.0
        %535 = vmatprep.subr.mxu0 0.0
        %536 = vmatpush1.msra.mxu0 0.0
        %537 = vmatprep.subr.mxu0 0.0
        %538 = vmatpush1.msra.mxu0 0.0
        %539 = vmatprep.subr.mxu0 0.0
        %540 = vmatpush1.msra.mxu0 0.0
        %541 = vmatprep.subr.mxu0 0.0
        %542 = vmatpush1.msra.mxu0 0.0
        %543 = vmatprep.subr.mxu0 0.0
        %544 = vmatpush1.msra.mxu0 0.0
        %545 = vmatprep.mubr.f32.mxu0 0.0
        %546 = vmatmul.mubr.f32.gmra.mrb[0].mxu0 %v476
        %v547 = vpop.f32.mrb[0].mxu0
        %v548 = vadd.f32 0.0, %v547
        %v549 = vpop.f32.mrb[0].mxu0
        %550 = vmatprep.mubr.f32.mxu0 0.0
        %551 = vmatmul.mubr.f32.gmra.mrb[0].mxu0 %v479
        %v552 = vpop.f32.mrb[0].mxu0
        %v553 = vadd.f32 0.0, %v552
        %v554 = vpop.f32.mrb[0].mxu0
        %555 = vdwg.mxu0
        %v556 = vadd.f32 %v456, %v548
        %v557 = vadd.f32 %v461, %v553
        %v559 = vlaneseq
        %v560 = vshrl.u32 %v559, 7
        %v561 = vsub.s32 0, %v560
        %v562 = vrot.slane %v280, %v561
        %v564 = vadd.f32 %v556, %v562
        %v565 = vadd.f32 %v557, %v562
        %v566 = vmax.f32 %v564, 0.0
        %v567 = vmax.f32 %v565, 0.0
        %568 = vst.msk [vmem:[#allocation2 + $0x1] sm:$0xff] %vm277, %v566
        %569 = vst.msk [vmem:[#allocation2 + $0x9] sm:$0xff] %vm277, %v567
        %v570 = vld [vmem:[%s4] sm:$0x1]
        %v571 = vld [vmem:[#allocation2] sm:$0xff]
        %v572 = vld [vmem:[#allocation2 + $0x8] sm:$0xff]
        %v573 = vld [vmem:[#allocation8] sm:$0xff]
        %v574 = vld [vmem:[#allocation8 + $0x8] sm:$0xff]
        %v575 = vld [vmem:[#allocation8 + $0x10] sm:$0xff]
        %v576 = vld [vmem:[#allocation8 + $0x18] sm:$0xff]
        %v577 = vld [vmem:[#allocation8 + $0x20] sm:$0xff]
        %v578 = vld [vmem:[#allocation8 + $0x28] sm:$0xff]
        %v579 = vld [vmem:[#allocation8 + $0x30] sm:$0xff]
        %v580 = vld [vmem:[#allocation8 + $0x38] sm:$0xff]
        %v581 = vld [vmem:[#allocation2 + $0x1] sm:$0xff]
        %v582 = vld [vmem:[#allocation2 + $0x9] sm:$0xff]
        %s583 = scalar_lea.vmem [#allocation8], 64
        %v584 = vld [vmem:[%s583] sm:$0xff]
        %v585 = vld [vmem:[%s583 + $0x8] sm:$0xff]
        %v586 = vld [vmem:[%s583 + $0x10] sm:$0xff]
        %v587 = vld [vmem:[%s583 + $0x18] sm:$0xff]
        %v588 = vld [vmem:[%s583 + $0x20] sm:$0xff]
        %v589 = vld [vmem:[%s583 + $0x28] sm:$0xff]
        %v590 = vld [vmem:[%s583 + $0x30] sm:$0xff]
        %v591 = vld [vmem:[%s583 + $0x38] sm:$0xff]
        %v593 = vsel %vm277, %v581, 0
        %v596 = vsel %vm277, %v582, 0
        %598 = vmatprep.subr.mxu0 0.0
        %599 = vmatpush1.msra.mxu0 %v584
        %600 = vmatprep.subr.mxu0 0.0
        %601 = vmatpush1.msra.mxu0 %v585
        %602 = vmatprep.subr.mxu0 0.0
        %603 = vmatpush1.msra.mxu0 %v586
        %604 = vmatprep.subr.mxu0 0.0
        %605 = vmatpush1.msra.mxu0 %v587
        %606 = vmatprep.subr.mxu0 0.0
        %607 = vmatpush1.msra.mxu0 %v588
        %608 = vmatprep.subr.mxu0 0.0
        %609 = vmatpush1.msra.mxu0 %v589
        %610 = vmatprep.subr.mxu0 0.0
        %611 = vmatpush1.msra.mxu0 %v590
        %612 = vmatprep.subr.mxu0 0.0
        %613 = vmatpush1.msra.mxu0 %v591
        %614 = vmatprep.subr.mxu0 0.0
        %615 = vmatpush1.msra.mxu0 0.0
        %616 = vmatprep.subr.mxu0 0.0
        %617 = vmatpush1.msra.mxu0 0.0
        %618 = vmatprep.subr.mxu0 0.0
        %619 = vmatpush1.msra.mxu0 0.0
        %620 = vmatprep.subr.mxu0 0.0
        %621 = vmatpush1.msra.mxu0 0.0
        %622 = vmatprep.subr.mxu0 0.0
        %623 = vmatpush1.msra.mxu0 0.0
        %624 = vmatprep.subr.mxu0 0.0
        %625 = vmatpush1.msra.mxu0 0.0
        %626 = vmatprep.subr.mxu0 0.0
        %627 = vmatpush1.msra.mxu0 0.0
        %628 = vmatprep.subr.mxu0 0.0
        %629 = vmatpush1.msra.mxu0 0.0
        %630 = vmatprep.subr.mxu0 0.0
        %631 = vmatpush1.msra.mxu0 0.0
        %632 = vmatprep.subr.mxu0 0.0
        %633 = vmatpush1.msra.mxu0 0.0
        %634 = vmatprep.subr.mxu0 0.0
        %635 = vmatpush1.msra.mxu0 0.0
        %636 = vmatprep.subr.mxu0 0.0
        %637 = vmatpush1.msra.mxu0 0.0
        %638 = vmatprep.subr.mxu0 0.0
        %639 = vmatpush1.msra.mxu0 0.0
        %640 = vmatprep.subr.mxu0 0.0
        %641 = vmatpush1.msra.mxu0 0.0
        %642 = vmatprep.subr.mxu0 0.0
        %643 = vmatpush1.msra.mxu0 0.0
        %644 = vmatprep.subr.mxu0 0.0
        %645 = vmatpush1.msra.mxu0 0.0
        %646 = vmatprep.subr.mxu0 0.0
        %647 = vmatpush1.msra.mxu0 0.0
        %648 = vmatprep.subr.mxu0 0.0
        %649 = vmatpush1.msra.mxu0 0.0
        %650 = vmatprep.subr.mxu0 0.0
        %651 = vmatpush1.msra.mxu0 0.0
        %652 = vmatprep.subr.mxu0 0.0
        %653 = vmatpush1.msra.mxu0 0.0
        %654 = vmatprep.subr.mxu0 0.0
        %655 = vmatpush1.msra.mxu0 0.0
        %656 = vmatprep.subr.mxu0 0.0
        %657 = vmatpush1.msra.mxu0 0.0
        %658 = vmatprep.subr.mxu0 0.0
        %659 = vmatpush1.msra.mxu0 0.0
        %660 = vmatprep.subr.mxu0 0.0
        %661 = vmatpush1.msra.mxu0 0.0
        %662 = vmatprep.mubr.f32.mxu0 0.0
        %663 = vmatmul.mubr.f32.gmra.mrb[0].mxu0 %v593
        %v664 = vpop.f32.mrb[0].mxu0
        %v665 = vadd.f32 0.0, %v664
        %v666 = vpop.f32.mrb[0].mxu0
        %667 = vmatprep.mubr.f32.mxu0 0.0
        %668 = vmatmul.mubr.f32.gmra.mrb[0].mxu0 %v596
        %v669 = vpop.f32.mrb[0].mxu0
        %v670 = vadd.f32 0.0, %v669
        %v671 = vpop.f32.mrb[0].mxu0
        %672 = vdwg.mxu0
        %v674 = vsel %vm277, %v571, 0
        %v677 = vsel %vm277, %v572, 0
        %679 = vmatprep.subr.mxu0 0.0
        %680 = vmatpush1.msra.mxu0 %v573
        %681 = vmatprep.subr.mxu0 0.0
        %682 = vmatpush1.msra.mxu0 %v574
        %683 = vmatprep.subr.mxu0 0.0
        %684 = vmatpush1.msra.mxu0 %v575
        %685 = vmatprep.subr.mxu0 0.0
        %686 = vmatpush1.msra.mxu0 %v576
        %687 = vmatprep.subr.mxu0 0.0
        %688 = vmatpush1.msra.mxu0 %v577
        %689 = vmatprep.subr.mxu0 0.0
        %690 = vmatpush1.msra.mxu0 %v578
        %691 = vmatprep.subr.mxu0 0.0
        %692 = vmatpush1.msra.mxu0 %v579
        %693 = vmatprep.subr.mxu0 0.0
        %694 = vmatpush1.msra.mxu0 %v580
        %695 = vmatprep.subr.mxu0 0.0
        %696 = vmatpush1.msra.mxu0 0.0
        %697 = vmatprep.subr.mxu0 0.0
        %698 = vmatpush1.msra.mxu0 0.0
        %699 = vmatprep.subr.mxu0 0.0
        %700 = vmatpush1.msra.mxu0 0.0
        %701 = vmatprep.subr.mxu0 0.0
        %702 = vmatpush1.msra.mxu0 0.0
        %703 = vmatprep.subr.mxu0 0.0
        %704 = vmatpush1.msra.mxu0 0.0
        %705 = vmatprep.subr.mxu0 0.0
        %706 = vmatpush1.msra.mxu0 0.0
        %707 = vmatprep.subr.mxu0 0.0
        %708 = vmatpush1.msra.mxu0 0.0
        %709 = vmatprep.subr.mxu0 0.0
        %710 = vmatpush1.msra.mxu0 0.0
        %711 = vmatprep.subr.mxu0 0.0
        %712 = vmatpush1.msra.mxu0 0.0
        %713 = vmatprep.subr.mxu0 0.0
        %714 = vmatpush1.msra.mxu0 0.0
        %715 = vmatprep.subr.mxu0 0.0
        %716 = vmatpush1.msra.mxu0 0.0
        %717 = vmatprep.subr.mxu0 0.0
        %718 = vmatpush1.msra.mxu0 0.0
        %719 = vmatprep.subr.mxu0 0.0
        %720 = vmatpush1.msra.mxu0 0.0
        %721 = vmatprep.subr.mxu0 0.0
        %722 = vmatpush1.msra.mxu0 0.0
        %723 = vmatprep.subr.mxu0 0.0
        %724 = vmatpush1.msra.mxu0 0.0
        %725 = vmatprep.subr.mxu0 0.0
        %726 = vmatpush1.msra.mxu0 0.0
        %727 = vmatprep.subr.mxu0 0.0
        %728 = vmatpush1.msra.mxu0 0.0
        %729 = vmatprep.subr.mxu0 0.0
        %730 = vmatpush1.msra.mxu0 0.0
        %731 = vmatprep.subr.mxu0 0.0
        %732 = vmatpush1.msra.mxu0 0.0
        %733 = vmatprep.subr.mxu0 0.0
        %734 = vmatpush1.msra.mxu0 0.0
        %735 = vmatprep.subr.mxu0 0.0
        %736 = vmatpush1.msra.mxu0 0.0
        %737 = vmatprep.subr.mxu0 0.0
        %738 = vmatpush1.msra.mxu0 0.0
        %739 = vmatprep.subr.mxu0 0.0
        %740 = vmatpush1.msra.mxu0 0.0
        %741 = vmatprep.subr.mxu0 0.0
        %742 = vmatpush1.msra.mxu0 0.0
        %743 = vmatprep.mubr.f32.mxu0 0.0
        %744 = vmatmul.mubr.f32.gmra.mrb[0].mxu0 %v674
        %v745 = vpop.f32.mrb[0].mxu0
        %v746 = vadd.f32 %v665, %v745
        %v747 = vpop.f32.mrb[0].mxu0
        %748 = vmatprep.mubr.f32.mxu0 0.0
        %749 = vmatmul.mubr.f32.gmra.mrb[0].mxu0 %v677
        %v750 = vpop.f32.mrb[0].mxu0
        %v751 = vadd.f32 %v670, %v750
        %v752 = vpop.f32.mrb[0].mxu0
        %753 = vdwg.mxu0
        %v754 = vld [vmem:[#allocation2 + $0x2] sm:$0xff]
        %v755 = vld [vmem:[#allocation2 + $0xa] sm:$0xff]
        %s756 = scalar_lea.vmem [#allocation8], 128
        %v757 = vld [vmem:[%s756] sm:$0xff]
        %v758 = vld [vmem:[%s756 + $0x8] sm:$0xff]
        %v759 = vld [vmem:[%s756 + $0x10] sm:$0xff]
        %v760 = vld [vmem:[%s756 + $0x18] sm:$0xff]
        %v761 = vld [vmem:[%s756 + $0x20] sm:$0xff]
        %v762 = vld [vmem:[%s756 + $0x28] sm:$0xff]
        %v763 = vld [vmem:[%s756 + $0x30] sm:$0xff]
        %v764 = vld [vmem:[%s756 + $0x38] sm:$0xff]
        %v766 = vsel %vm277, %v754, 0
        %v769 = vsel %vm277, %v755, 0
        %771 = vmatprep.subr.mxu0 0.0
        %772 = vmatpush1.msra.mxu0 %v757
        %773 = vmatprep.subr.mxu0 0.0
        %774 = vmatpush1.msra.mxu0 %v758
        %775 = vmatprep.subr.mxu0 0.0
        %776 = vmatpush1.msra.mxu0 %v759
        %777 = vmatprep.subr.mxu0 0.0
        %778 = vmatpush1.msra.mxu0 %v760
        %779 = vmatprep.subr.mxu0 0.0
        %780 = vmatpush1.msra.mxu0 %v761
        %781 = vmatprep.subr.mxu0 0.0
        %782 = vmatpush1.msra.mxu0 %v762
        %783 = vmatprep.subr.mxu0 0.0
        %784 = vmatpush1.msra.mxu0 %v763
        %785 = vmatprep.subr.mxu0 0.0
        %786 = vmatpush1.msra.mxu0 %v764
        %787 = vmatprep.subr.mxu0 0.0
        %788 = vmatpush1.msra.mxu0 0.0
        %789 = vmatprep.subr.mxu0 0.0
        %790 = vmatpush1.msra.mxu0 0.0
        %791 = vmatprep.subr.mxu0 0.0
        %792 = vmatpush1.msra.mxu0 0.0
        %793 = vmatprep.subr.mxu0 0.0
        %794 = vmatpush1.msra.mxu0 0.0
        %795 = vmatprep.subr.mxu0 0.0
        %796 = vmatpush1.msra.mxu0 0.0
        %797 = vmatprep.subr.mxu0 0.0
        %798 = vmatpush1.msra.mxu0 0.0
        %799 = vmatprep.subr.mxu0 0.0
        %800 = vmatpush1.msra.mxu0 0.0
        %801 = vmatprep.subr.mxu0 0.0
        %802 = vmatpush1.msra.mxu0 0.0
        %803 = vmatprep.subr.mxu0 0.0
        %804 = vmatpush1.msra.mxu0 0.0
        %805 = vmatprep.subr.mxu0 0.0
        %806 = vmatpush1.msra.mxu0 0.0
        %807 = vmatprep.subr.mxu0 0.0
        %808 = vmatpush1.msra.mxu0 0.0
        %809 = vmatprep.subr.mxu0 0.0
        %810 = vmatpush1.msra.mxu0 0.0
        %811 = vmatprep.subr.mxu0 0.0
        %812 = vmatpush1.msra.mxu0 0.0
        %813 = vmatprep.subr.mxu0 0.0
        %814 = vmatpush1.msra.mxu0 0.0
        %815 = vmatprep.subr.mxu0 0.0
        %816 = vmatpush1.msra.mxu0 0.0
        %817 = vmatprep.subr.mxu0 0.0
        %818 = vmatpush1.msra.mxu0 0.0
        %819 = vmatprep.subr.mxu0 0.0
        %820 = vmatpush1.msra.mxu0 0.0
        %821 = vmatprep.subr.mxu0 0.0
        %822 = vmatpush1.msra.mxu0 0.0
        %823 = vmatprep.subr.mxu0 0.0
        %824 = vmatpush1.msra.mxu0 0.0
        %825 = vmatprep.subr.mxu0 0.0
        %826 = vmatpush1.msra.mxu0 0.0
        %827 = vmatprep.subr.mxu0 0.0
        %828 = vmatpush1.msra.mxu0 0.0
        %829 = vmatprep.subr.mxu0 0.0
        %830 = vmatpush1.msra.mxu0 0.0
        %831 = vmatprep.subr.mxu0 0.0
        %832 = vmatpush1.msra.mxu0 0.0
        %833 = vmatprep.subr.mxu0 0.0
        %834 = vmatpush1.msra.mxu0 0.0
        %835 = vmatprep.mubr.f32.mxu0 0.0
        %836 = vmatmul.mubr.f32.gmra.mrb[0].mxu0 %v766
        %v837 = vpop.f32.mrb[0].mxu0
        %v838 = vadd.f32 0.0, %v837
        %v839 = vpop.f32.mrb[0].mxu0
        %840 = vmatprep.mubr.f32.mxu0 0.0
        %841 = vmatmul.mubr.f32.gmra.mrb[0].mxu0 %v769
        %v842 = vpop.f32.mrb[0].mxu0
        %v843 = vadd.f32 0.0, %v842
        %v844 = vpop.f32.mrb[0].mxu0
        %845 = vdwg.mxu0
        %v846 = vadd.f32 %v746, %v838
        %v847 = vadd.f32 %v751, %v843
        %v849 = vlaneseq
        %v850 = vshrl.u32 %v849, 7
        %v851 = vsub.s32 0, %v850
        %v852 = vrot.slane %v570, %v851
        %v854 = vadd.f32 %v846, %v852
        %v855 = vadd.f32 %v847, %v852
        %v856 = vadd.f32 %v275, %v854
        %v857 = vadd.f32 %v276, %v855
        %v858 = vmax.f32 %v856, 0.0
        %v859 = vmax.f32 %v857, 0.0
        %860 = vst.msk [vmem:[%s271] sm:$0xff] %vm277, %v858
        %861 = vst.msk [vmem:[%s271 + $0x8] sm:$0xff] %vm277, %v859
        %s862 = sand.u32 %s141, 1
        %s863 = scalar_lea.sflag [#allocation5], %s862
        %s864 = sand.u32 %s141, 1
        %s865 = smul.addr %s864, 16
        %s866 = scalar_lea.vmem [#allocation9], %s865
        // Predicated region
        $region53: #{tpu_custom_call.1} parent=39 // pred_check
          %p867 = pneg %p151
        $region54: #{tpu_custom_call.1} parent=39 // pred_check_branch
          %869 = sbr.rel (%p867) target = $region56
        $region55: #{tpu_custom_call.1} parent=39 // pred_region
          %s871 = ssub.s32 256, 256
          %872 = vsyncadd %s863, %s871
          %s873 = smul.addr %s23, 2
          %s874 = smul.addr %s873, 128
          %s875 = scalar_lea.hbm %s5, %s874
          %s876 = sshll.u32 %s866, 4
          %s877 = int_to_ptr.vmem [resolvable:$true] %s876
          %882 = dma.vmem_to_hbm [thread:$0]  %s877, 256, %s875, %s863, 128, 128, 8
        $region56: #{tpu_custom_call.1} parent=39 // pred_fallthru
          _
      $region40: #{tpu_custom_call.1} parent=5 // pred_fallthru
        _
      %p883 = scmp.le.s32.totalorder 2, %s18
      // Predicated region
      $region57: #{tpu_custom_call.1} parent=5 // pred_check
        %p884 = pneg %p883
      $region58: #{tpu_custom_call.1} parent=5 // pred_check_branch
        %886 = sbr.rel (%p884) target = $region60
      $region59: #{tpu_custom_call.1} parent=5 // pred_region
        %s887 = ssub.s32 %s18, 2
        // Predicated region
        $region61: #{tpu_custom_call.1} parent=59 // pred_check
          %p888 = pneg %p157
        $region62: #{tpu_custom_call.1} parent=59 // pred_check_branch
          %890 = sbr.rel (%p888) target = $region64
        $region63: #{tpu_custom_call.1} parent=59 // pred_region
          %s891 = sand.u32 %s142, 1
          %s892 = scalar_lea.sflag [#allocation5], %s891
          %s893 = sand.u32 %s142, 1
          %s894 = smul.addr %s893, 16
          %s895 = scalar_lea.vmem [#allocation9], %s894
          %896 = dma.done %s892, 256
        $region64: #{tpu_custom_call.1} parent=59 // pred_fallthru
          _
      $region60: #{tpu_custom_call.1} parent=5 // pred_fallthru
        _
    $region6: #{tpu_custom_call.1} parent=1 // loop_footer
      %s22 = sadd.s32 1, %s18
    $region7: #{tpu_custom_call.1} parent=1 // loop_footer_branch
      %17 = sbr.rel target = $region3
    $region8: #{tpu_custom_call.1} parent=1 // loop_exit
      _
    %897 = vsyncpa [#allocation4], 1
    %s898 = scalar_lea.sflag [#allocation4], 1
    %899 = vsyncpa %s898, 1
    %900 = vsyncpa [#allocation7], 1
    %901 = vsyncpa [#allocation5], 1
    %s902 = scalar_lea.sflag [#allocation5], 1
    %903 = vsyncpa %s902, 1

</llo_original>
